<compile_context>
chip_gen: v7x
topology: tpu7x:2x2x1
jax: 0.10.0
libtpu: 0.0.40
codegen_flags: <defaults>
</compile_context>

<pallas_src>
import functools

import jax
import jax.numpy as jnp
from jax.experimental import pallas as pl
from jax.experimental.pallas import tpu as pltpu


def rgat_fused_kernel(adj_ref, feat_ref, w_ref, out_ref, *,
                      num_layers, num_rel, hidden):
    """Full RGAT forward for one batch element. Grid = (B,).

    adj_ref : (R, N, N)    all relations for batch b
    feat_ref: (N, H)       input features for batch b
    w_ref   : (L, H, R*H)  pre-transposed, relation-concatenated weights (VMEM-resident)
    out_ref : (N, H)       output features for batch b
    """
    x = feat_ref[...]                      # (N, H) f32 — no cast needed, already f32
    inv_r = 1.0 / float(num_rel)

    for layer in range(num_layers):        # L is tiny and static — unrolled at trace time
        w_l = w_ref[layer]                 # (H, R*H)
        # All relation Linears fused into one MXU call: (N, H) @ (H, R*H) -> (N, R*H).
        h_all = jnp.dot(x, w_l, preferred_element_type=jnp.float32)

        addition = jnp.zeros(x.shape, jnp.float32)
        for r in range(num_rel):           # R is tiny and static — unrolled
            h_r = h_all[:, r * hidden:(r + 1) * hidden]          # (N, H) static slice
            h_r = jnp.dot(adj_ref[r], h_r, preferred_element_type=jnp.float32)
            addition = addition + jnp.maximum(h_r, 0.0)          # relu(adj_r @ h_r)

        # feature = LayerNorm_no_affine( relu(addition) / R ), eps=1e-5, biased var
        xn = jnp.maximum(addition, 0.0) * inv_r
        mean = jnp.mean(xn, axis=-1, keepdims=True)
        var = jnp.mean((xn - mean) ** 2, axis=-1, keepdims=True)
        x = (xn - mean) * jax.lax.rsqrt(var + 1e-5)
        # TODO(synk): training-mode dropout between layers not implemented (eval identity).

    out_ref[...] = x.astype(out_ref.dtype)


def rgat_forward(adj, feature, layer_weights):
    """Full RGAT forward (eval mode).

    adj: (B, R, N, N), feature: (B, N, H),
    layer_weights: list of (R, H, H) arrays (PyTorch Linear (out, in) layout), one per layer.
    Returns (B, N, H).
    """
    B, R, N, _ = adj.shape
    H = feature.shape[-1]
    L = len(layer_weights)

    # Pack weights once in the wrapper (free layout plumbing, done at trace time):
    # (L, R, H_out, H_in) -> (L, H_in, R, H_out) -> (L, H_in, R*H_out)
    # so that w_packed[l][:, r*H:(r+1)*H] == W[l][r].T and the kernel does x @ w.
    w = jnp.stack(layer_weights)
    w_packed = jnp.transpose(w, (0, 3, 1, 2)).reshape(L, H, R * H)

    kernel = functools.partial(rgat_fused_kernel,
                               num_layers=L, num_rel=R, hidden=H)
    return pl.pallas_call(
        kernel,
        out_shape=jax.ShapeDtypeStruct((B, N, H), feature.dtype),
        grid=(B,),
        in_specs=[
            pl.BlockSpec((None, R, N, N), lambda b: (b, 0, 0, 0)),   # adj (all relations)
            pl.BlockSpec((None, N, H), lambda b: (b, 0, 0)),         # feature
            pl.BlockSpec((L, H, R * H), lambda b: (0, 0, 0)),        # weights, resident
        ],
        out_specs=pl.BlockSpec((None, N, H), lambda b: (b, 0, 0)),
        compiler_params=pltpu.CompilerParams(
            dimension_semantics=("parallel",)),
    )(adj, feature, w_packed)


def rgat_reference(adj, feature, layer_weights):
    """Pure-JAX reference mirroring the PyTorch forward (eval mode)."""
    R = adj.shape[1]
    for w in layer_weights:
        addition = jnp.zeros_like(feature)
        for rel in range(R):
            h_r = jnp.einsum("bnh,oh->bno", feature, w[rel])
            h_r = jax.nn.relu(jnp.einsum("bnm,bmh->bnh", adj[:, rel], h_r))
            addition = addition + h_r
        x = jax.nn.relu(addition) / R
        mean = jnp.mean(x, axis=-1, keepdims=True)
        var = jnp.mean((x - mean) ** 2, axis=-1, keepdims=True)
        feature = (x - mean) / jnp.sqrt(var + 1e-5)
    return feature


if __name__ == "__main__":
    # Small shapes: batch=2, nodes=8, hidden=32, whole_tag_size=3, num_layers=2
    B, N, H = 2, 8, 32
    WHOLE_TAG_SIZE = 3
    NUM_LAYERS = 2

    key = jax.random.PRNGKey(0)
    k_adj, k_feat, k_w0, k_w1 = jax.random.split(key, 4)

    # Non-negative adjacency (row-normalized-ish), float32
    adj = jax.random.uniform(k_adj, (B, WHOLE_TAG_SIZE, N, N), dtype=jnp.float32)
    adj = adj / jnp.sum(adj, axis=-1, keepdims=True)

    feature = jax.random.normal(k_feat, (B, N, H), dtype=jnp.float32)

    # Deterministic Linear weights: (R, H, H) per layer, kaiming-uniform-like scale
    bound = 1.0 / jnp.sqrt(H)
    layer_weights = [
        jax.random.uniform(k_w0, (WHOLE_TAG_SIZE, H, H), minval=-bound, maxval=bound,
                           dtype=jnp.float32),
        jax.random.uniform(k_w1, (WHOLE_TAG_SIZE, H, H), minval=-bound, maxval=bound,
                           dtype=jnp.float32),
    ]

    out = rgat_forward(adj, feature, layer_weights)
    out = jax.block_until_ready(out)

    ref = rgat_reference(adj, feature, layer_weights)
    assert out.shape == (B, N, H)
    assert jnp.allclose(out, ref, atol=1e-4, rtol=1e-4), "mismatch vs reference"

    print("KERNEL_OK")
</pallas_src>

<mosaic_0001>
module attributes {stable_mosaic.version = 11 : i64} {
  func.func @rgat_fused_kernel(%arg0: i32, %arg1: memref<1x3x8x8xf32, #tpu.memory_space<vmem>>, %arg2: memref<1x8x32xf32, #tpu.memory_space<vmem>>, %arg3: memref<2x32x96xf32, #tpu.memory_space<vmem>>, %arg4: memref<1x8x32xf32, #tpu.memory_space<vmem>>) attributes {dimension_semantics = [#tpu.dimension_semantics<parallel>], iteration_bounds = array<i64: 2>, scalar_prefetch = 0 : i64, scratch_operands = 0 : i64, tpu.core_type = #tpu.core_type<tc>, window_params = [{transform_indices = @transform_0, window_bounds = array<i64: 1, 3, 8, 8>}, {transform_indices = @transform_1, window_bounds = array<i64: 1, 8, 32>}, {pipeline_mode = #tpu.pipeline_mode<synchronous>, transform_indices = @transform_2, window_bounds = array<i64: 2, 32, 96>}, {transform_indices = @transform_3, window_bounds = array<i64: 1, 8, 32>}]} {
    %c0 = arith.constant 0 : index
    %c0_0 = arith.constant 0 : index
    %c0_1 = arith.constant 0 : index
    %0 = vector.load %arg2[%c0, %c0_0, %c0_1] : memref<1x8x32xf32, #tpu.memory_space<vmem>>, vector<1x8x32xf32>
    %1 = vector.shape_cast %0 : vector<1x8x32xf32> to vector<8x32xf32>
    %c0_2 = arith.constant 0 : index
    %c0_3 = arith.constant 0 : index
    %c0_4 = arith.constant 0 : index
    %2 = vector.load %arg3[%c0_2, %c0_3, %c0_4] : memref<2x32x96xf32, #tpu.memory_space<vmem>>, vector<1x32x96xf32>
    %3 = vector.shape_cast %2 : vector<1x32x96xf32> to vector<32x96xf32>
    %cst = arith.constant dense<0.000000e+00> : vector<8x96xf32>
    %4 = tpu.matmul %1, %3, %cst {dimension_numbers = #tpu.dot_dimension_numbers<[1], [0], [0], [1], [0, 0, 1, 1], [], []>} : vector<8x32xf32>, vector<32x96xf32>, vector<8x96xf32> -> vector<8x96xf32>
    %cst_5 = arith.constant 0.000000e+00 : f32
    %5 = vector.broadcast %cst_5 : f32 to vector<8x32xf32>
    %6 = vector.extract_strided_slice %4 {offsets = [0, 0], sizes = [8, 32], strides = [1, 1]} : vector<8x96xf32> to vector<8x32xf32>
    %c0_6 = arith.constant 0 : index
    %c0_7 = arith.constant 0 : index
    %c0_8 = arith.constant 0 : index
    %c0_9 = arith.constant 0 : index
    %7 = vector.load %arg1[%c0_6, %c0_7, %c0_8, %c0_9] : memref<1x3x8x8xf32, #tpu.memory_space<vmem>>, vector<1x1x8x8xf32>
    %8 = vector.shape_cast %7 : vector<1x1x8x8xf32> to vector<8x8xf32>
    %cst_10 = arith.constant dense<0.000000e+00> : vector<8x32xf32>
    %9 = tpu.matmul %8, %6, %cst_10 {dimension_numbers = #tpu.dot_dimension_numbers<[1], [0], [0], [1], [0, 0, 1, 1], [], []>} : vector<8x8xf32>, vector<8x32xf32>, vector<8x32xf32> -> vector<8x32xf32>
    %cst_11 = arith.constant 0.000000e+00 : f32
    %10 = vector.broadcast %cst_11 : f32 to vector<8x32xf32>
    %11 = arith.maximumf %9, %10 : vector<8x32xf32>
    %12 = arith.addf %5, %11 : vector<8x32xf32>
    %13 = vector.extract_strided_slice %4 {offsets = [0, 32], sizes = [8, 32], strides = [1, 1]} : vector<8x96xf32> to vector<8x32xf32>
    %c0_12 = arith.constant 0 : index
    %c1 = arith.constant 1 : index
    %c0_13 = arith.constant 0 : index
    %c0_14 = arith.constant 0 : index
    %14 = vector.load %arg1[%c0_12, %c1, %c0_13, %c0_14] : memref<1x3x8x8xf32, #tpu.memory_space<vmem>>, vector<1x1x8x8xf32>
    %15 = vector.shape_cast %14 : vector<1x1x8x8xf32> to vector<8x8xf32>
    %cst_15 = arith.constant dense<0.000000e+00> : vector<8x32xf32>
    %16 = tpu.matmul %15, %13, %cst_15 {dimension_numbers = #tpu.dot_dimension_numbers<[1], [0], [0], [1], [0, 0, 1, 1], [], []>} : vector<8x8xf32>, vector<8x32xf32>, vector<8x32xf32> -> vector<8x32xf32>
    %cst_16 = arith.constant 0.000000e+00 : f32
    %17 = vector.broadcast %cst_16 : f32 to vector<8x32xf32>
    %18 = arith.maximumf %16, %17 : vector<8x32xf32>
    %19 = arith.addf %12, %18 : vector<8x32xf32>
    %20 = vector.extract_strided_slice %4 {offsets = [0, 64], sizes = [8, 32], strides = [1, 1]} : vector<8x96xf32> to vector<8x32xf32>
    %c0_17 = arith.constant 0 : index
    %c2 = arith.constant 2 : index
    %c0_18 = arith.constant 0 : index
    %c0_19 = arith.constant 0 : index
    %21 = vector.load %arg1[%c0_17, %c2, %c0_18, %c0_19] : memref<1x3x8x8xf32, #tpu.memory_space<vmem>>, vector<1x1x8x8xf32>
    %22 = vector.shape_cast %21 : vector<1x1x8x8xf32> to vector<8x8xf32>
    %cst_20 = arith.constant dense<0.000000e+00> : vector<8x32xf32>
    %23 = tpu.matmul %22, %20, %cst_20 {dimension_numbers = #tpu.dot_dimension_numbers<[1], [0], [0], [1], [0, 0, 1, 1], [], []>} : vector<8x8xf32>, vector<8x32xf32>, vector<8x32xf32> -> vector<8x32xf32>
    %cst_21 = arith.constant 0.000000e+00 : f32
    %24 = vector.broadcast %cst_21 : f32 to vector<8x32xf32>
    %25 = arith.maximumf %23, %24 : vector<8x32xf32>
    %26 = arith.addf %19, %25 : vector<8x32xf32>
    %cst_22 = arith.constant 0.000000e+00 : f32
    %27 = vector.broadcast %cst_22 : f32 to vector<8x32xf32>
    %28 = arith.maximumf %26, %27 : vector<8x32xf32>
    %cst_23 = arith.constant 0.333333343 : f32
    %29 = vector.broadcast %cst_23 : f32 to vector<8x32xf32>
    %30 = arith.mulf %28, %29 : vector<8x32xf32>
    %cst_24 = arith.constant dense<0.000000e+00> : vector<8xf32>
    %31 = vector.multi_reduction <add>, %30, %cst_24 [1] : vector<8x32xf32> to vector<8xf32>
    %32 = vector.shape_cast %31 : vector<8xf32> to vector<8x1xf32>
    %cst_25 = arith.constant 3.200000e+01 : f32
    %33 = vector.broadcast %cst_25 : f32 to vector<8x1xf32>
    %34 = arith.divf %32, %33 : vector<8x1xf32>
    %35 = vector.broadcast %34 : vector<8x1xf32> to vector<8x32xf32>
    %36 = arith.subf %30, %35 : vector<8x32xf32>
    %37 = arith.mulf %36, %36 : vector<8x32xf32>
    %cst_26 = arith.constant dense<0.000000e+00> : vector<8xf32>
    %38 = vector.multi_reduction <add>, %37, %cst_26 [1] : vector<8x32xf32> to vector<8xf32>
    %39 = vector.shape_cast %38 : vector<8xf32> to vector<8x1xf32>
    %cst_27 = arith.constant 3.200000e+01 : f32
    %40 = vector.broadcast %cst_27 : f32 to vector<8x1xf32>
    %41 = arith.divf %39, %40 : vector<8x1xf32>
    %42 = vector.broadcast %34 : vector<8x1xf32> to vector<8x32xf32>
    %43 = arith.subf %30, %42 : vector<8x32xf32>
    %cst_28 = arith.constant 9.99999974E-6 : f32
    %44 = vector.broadcast %cst_28 : f32 to vector<8x1xf32>
    %45 = arith.addf %41, %44 : vector<8x1xf32>
    %46 = math.rsqrt %45 : vector<8x1xf32>
    %47 = vector.broadcast %46 : vector<8x1xf32> to vector<8x32xf32>
    %48 = arith.mulf %43, %47 : vector<8x32xf32>
    %c1_29 = arith.constant 1 : index
    %c0_30 = arith.constant 0 : index
    %c0_31 = arith.constant 0 : index
    %49 = vector.load %arg3[%c1_29, %c0_30, %c0_31] : memref<2x32x96xf32, #tpu.memory_space<vmem>>, vector<1x32x96xf32>
    %50 = vector.shape_cast %49 : vector<1x32x96xf32> to vector<32x96xf32>
    %cst_32 = arith.constant dense<0.000000e+00> : vector<8x96xf32>
    %51 = tpu.matmul %48, %50, %cst_32 {dimension_numbers = #tpu.dot_dimension_numbers<[1], [0], [0], [1], [0, 0, 1, 1], [], []>} : vector<8x32xf32>, vector<32x96xf32>, vector<8x96xf32> -> vector<8x96xf32>
    %cst_33 = arith.constant 0.000000e+00 : f32
    %52 = vector.broadcast %cst_33 : f32 to vector<8x32xf32>
    %53 = vector.extract_strided_slice %51 {offsets = [0, 0], sizes = [8, 32], strides = [1, 1]} : vector<8x96xf32> to vector<8x32xf32>
    %c0_34 = arith.constant 0 : index
    %c0_35 = arith.constant 0 : index
    %c0_36 = arith.constant 0 : index
    %c0_37 = arith.constant 0 : index
    %54 = vector.load %arg1[%c0_34, %c0_35, %c0_36, %c0_37] : memref<1x3x8x8xf32, #tpu.memory_space<vmem>>, vector<1x1x8x8xf32>
    %55 = vector.shape_cast %54 : vector<1x1x8x8xf32> to vector<8x8xf32>
    %cst_38 = arith.constant dense<0.000000e+00> : vector<8x32xf32>
    %56 = tpu.matmul %55, %53, %cst_38 {dimension_numbers = #tpu.dot_dimension_numbers<[1], [0], [0], [1], [0, 0, 1, 1], [], []>} : vector<8x8xf32>, vector<8x32xf32>, vector<8x32xf32> -> vector<8x32xf32>
    %cst_39 = arith.constant 0.000000e+00 : f32
    %57 = vector.broadcast %cst_39 : f32 to vector<8x32xf32>
    %58 = arith.maximumf %56, %57 : vector<8x32xf32>
    %59 = arith.addf %52, %58 : vector<8x32xf32>
    %60 = vector.extract_strided_slice %51 {offsets = [0, 32], sizes = [8, 32], strides = [1, 1]} : vector<8x96xf32> to vector<8x32xf32>
    %c0_40 = arith.constant 0 : index
    %c1_41 = arith.constant 1 : index
    %c0_42 = arith.constant 0 : index
    %c0_43 = arith.constant 0 : index
    %61 = vector.load %arg1[%c0_40, %c1_41, %c0_42, %c0_43] : memref<1x3x8x8xf32, #tpu.memory_space<vmem>>, vector<1x1x8x8xf32>
    %62 = vector.shape_cast %61 : vector<1x1x8x8xf32> to vector<8x8xf32>
    %cst_44 = arith.constant dense<0.000000e+00> : vector<8x32xf32>
    %63 = tpu.matmul %62, %60, %cst_44 {dimension_numbers = #tpu.dot_dimension_numbers<[1], [0], [0], [1], [0, 0, 1, 1], [], []>} : vector<8x8xf32>, vector<8x32xf32>, vector<8x32xf32> -> vector<8x32xf32>
    %cst_45 = arith.constant 0.000000e+00 : f32
    %64 = vector.broadcast %cst_45 : f32 to vector<8x32xf32>
    %65 = arith.maximumf %63, %64 : vector<8x32xf32>
    %66 = arith.addf %59, %65 : vector<8x32xf32>
    %67 = vector.extract_strided_slice %51 {offsets = [0, 64], sizes = [8, 32], strides = [1, 1]} : vector<8x96xf32> to vector<8x32xf32>
    %c0_46 = arith.constant 0 : index
    %c2_47 = arith.constant 2 : index
    %c0_48 = arith.constant 0 : index
    %c0_49 = arith.constant 0 : index
    %68 = vector.load %arg1[%c0_46, %c2_47, %c0_48, %c0_49] : memref<1x3x8x8xf32, #tpu.memory_space<vmem>>, vector<1x1x8x8xf32>
    %69 = vector.shape_cast %68 : vector<1x1x8x8xf32> to vector<8x8xf32>
    %cst_50 = arith.constant dense<0.000000e+00> : vector<8x32xf32>
    %70 = tpu.matmul %69, %67, %cst_50 {dimension_numbers = #tpu.dot_dimension_numbers<[1], [0], [0], [1], [0, 0, 1, 1], [], []>} : vector<8x8xf32>, vector<8x32xf32>, vector<8x32xf32> -> vector<8x32xf32>
    %cst_51 = arith.constant 0.000000e+00 : f32
    %71 = vector.broadcast %cst_51 : f32 to vector<8x32xf32>
    %72 = arith.maximumf %70, %71 : vector<8x32xf32>
    %73 = arith.addf %66, %72 : vector<8x32xf32>
    %cst_52 = arith.constant 0.000000e+00 : f32
    %74 = vector.broadcast %cst_52 : f32 to vector<8x32xf32>
    %75 = arith.maximumf %73, %74 : vector<8x32xf32>
    %cst_53 = arith.constant 0.333333343 : f32
    %76 = vector.broadcast %cst_53 : f32 to vector<8x32xf32>
    %77 = arith.mulf %75, %76 : vector<8x32xf32>
    %cst_54 = arith.constant dense<0.000000e+00> : vector<8xf32>
    %78 = vector.multi_reduction <add>, %77, %cst_54 [1] : vector<8x32xf32> to vector<8xf32>
    %79 = vector.shape_cast %78 : vector<8xf32> to vector<8x1xf32>
    %cst_55 = arith.constant 3.200000e+01 : f32
    %80 = vector.broadcast %cst_55 : f32 to vector<8x1xf32>
    %81 = arith.divf %79, %80 : vector<8x1xf32>
    %82 = vector.broadcast %81 : vector<8x1xf32> to vector<8x32xf32>
    %83 = arith.subf %77, %82 : vector<8x32xf32>
    %84 = arith.mulf %83, %83 : vector<8x32xf32>
    %cst_56 = arith.constant dense<0.000000e+00> : vector<8xf32>
    %85 = vector.multi_reduction <add>, %84, %cst_56 [1] : vector<8x32xf32> to vector<8xf32>
    %86 = vector.shape_cast %85 : vector<8xf32> to vector<8x1xf32>
    %cst_57 = arith.constant 3.200000e+01 : f32
    %87 = vector.broadcast %cst_57 : f32 to vector<8x1xf32>
    %88 = arith.divf %86, %87 : vector<8x1xf32>
    %89 = vector.broadcast %81 : vector<8x1xf32> to vector<8x32xf32>
    %90 = arith.subf %77, %89 : vector<8x32xf32>
    %cst_58 = arith.constant 9.99999974E-6 : f32
    %91 = vector.broadcast %cst_58 : f32 to vector<8x1xf32>
    %92 = arith.addf %88, %91 : vector<8x1xf32>
    %93 = math.rsqrt %92 : vector<8x1xf32>
    %94 = vector.broadcast %93 : vector<8x1xf32> to vector<8x32xf32>
    %95 = arith.mulf %90, %94 : vector<8x32xf32>
    %c0_59 = arith.constant 0 : index
    %c0_60 = arith.constant 0 : index
    %c0_61 = arith.constant 0 : index
    %96 = vector.load %arg4[%c0_59, %c0_60, %c0_61] : memref<1x8x32xf32, #tpu.memory_space<vmem>>, vector<1x8x32xf32>
    %97 = vector.shape_cast %96 : vector<1x8x32xf32> to vector<8x32xf32>
    %98 = vector.shape_cast %95 : vector<8x32xf32> to vector<1x8x32xf32>
    tpu.vector_store %arg4[%c0_59, %c0_60, %c0_61], %98 {strides = array<i32>} : memref<1x8x32xf32, #tpu.memory_space<vmem>>, vector<1x8x32xf32>,
    return
  }
  func.func @transform_0(%arg0: i32) -> (i32, i32, i32, i32) {
    %c0_i32 = arith.constant 0 : i32
    %c0_i32_0 = arith.constant 0 : i32
    %c0_i32_1 = arith.constant 0 : i32
    %c0_i32_2 = arith.constant 0 : i32
    return %arg0, %c0_i32, %c0_i32_0, %c0_i32_1 : i32, i32, i32, i32
  }
  func.func @transform_1(%arg0: i32) -> (i32, i32, i32) {
    %c0_i32 = arith.constant 0 : i32
    %c0_i32_0 = arith.constant 0 : i32
    %c0_i32_1 = arith.constant 0 : i32
    return %arg0, %c0_i32, %c0_i32_0 : i32, i32, i32
  }
  func.func @transform_2(%arg0: i32) -> (i32, i32, i32) {
    %c0_i32 = arith.constant 0 : i32
    %c0_i32_0 = arith.constant 0 : i32
    %c0_i32_1 = arith.constant 0 : i32
    %c0_i32_2 = arith.constant 0 : i32
    return %c0_i32, %c0_i32_0, %c0_i32_1 : i32, i32, i32
  }
  func.func @transform_3(%arg0: i32) -> (i32, i32, i32) {
    %c0_i32 = arith.constant 0 : i32
    %c0_i32_0 = arith.constant 0 : i32
    %c0_i32_1 = arith.constant 0 : i32
    return %arg0, %c0_i32, %c0_i32_0 : i32, i32, i32
  }
}

</mosaic_0001>

<llo_original>
// kernel: tpu_custom_call.1
$region0: #{tpu_custom_call.1}
  #allocation0 [shape = 'u32[]', space=smem, size = 0x4, offset = 0x4, fixed_abs, tag = 'smem constant byte address 0x4 - core index']
  #allocation1 [shape = 'u32[144,128]{1,0:T(1,128)}', space=vmem, size = 0x12000, scoped, tag = 'internal scratch']
  %s0 = inlined_call_operand.hbm [shape: f32[2,3,8,8], index: 0, kind: input, shape index: {}]
  %s1 = inlined_call_operand.hbm [shape: f32[2,8,32], index: 1, kind: input, shape index: {}]
  %s2 = inlined_call_operand.hbm [shape: f32[2,32,96], index: 2, kind: input, shape index: {}]
  %s3 = inlined_call_operand.hbm [shape: f32[2,8,32], index: 3, kind: output, shape index: {}]
  %s4 = sld [smem:[#allocation0]]
  $region57: #{tpu_custom_call.1} parent=0
    _
  %s6 = ssub.s32 1, %s4
  %s7 = scalar_select 0, %s6, %s4
  $region1: #{tpu_custom_call.1} parent=0
    #allocation2 [shape = 'u8[24576]{0}', space=vmem, size = 0x6000, scoped, tag = 'input window, operand 0']
    #allocation3 [shape = 's32[2]{0}', space=sflag, size = 0x8, scoped, tag = 'scoped memory for tpu_custom_call.1']
    #allocation4 [shape = 's32[2]{0}', space=sflag, size = 0x8, scoped, tag = 'scoped memory for tpu_custom_call.1']
    #allocation5 [shape = 'u8[8192]{0}', space=vmem, size = 0x2000, scoped, tag = 'input window, operand 1']
    #allocation6 [shape = 's32[2]{0}', space=sflag, size = 0x8, scoped, tag = 'scoped memory for tpu_custom_call.1']
    #allocation7 [shape = 'u8[32768]{0}', space=vmem, size = 0x8000, scoped, tag = 'input window, operand 2, single buffered']
    #allocation8 [shape = 'u8[8192]{0}', space=vmem, size = 0x2000, scoped, tag = 'output window, operand 0']
    %8 = vsyncpa [#allocation3], 0
    %s9 = scalar_lea.sflag [#allocation3], 1
    %10 = vsyncpa %s9, 0
    %11 = vsyncpa [#allocation6], 0
    %s12 = scalar_lea.sflag [#allocation6], 1
    %13 = vsyncpa %s12, 0
    %14 = vsyncpa [#allocation4], 0
    %s15 = scalar_lea.sflag [#allocation4], 1
    %16 = vsyncpa %s15, 0
    loop: start=0, step=1, limit=4
    $region2: #{tpu_custom_call.1} parent=1 // loop_pre_header
      _
    $region3: #{tpu_custom_call.1} parent=1 // loop_header
      %s18 = sphi 0, %s22
      %p19 = scmp.ge.s32.totalorder %s18, 4
      %s28 = sphi 0, %s30
      %s31 = sphi 0, %s28
      %s32 = sphi 0, %s31
      %s48 = sphi 0, %s32
      %s54 = sphi 0, %s56
      %s57 = sphi 0, %s54
      %s58 = sphi 0, %s57
      %s74 = sphi 0, %s58
      %s78 = sphi 0, %s78
      %s80 = sphi 0, %s78
      %s81 = sphi 0, %s80
      %s95 = sphi 0, %s81
      %s101 = sphi 0, %s103
      %s104 = sphi 0, %s101
      %s105 = sphi 0, %s104
      %s121 = sphi 0, %s105
    $region4: #{tpu_custom_call.1} parent=1 // loop_header_branch
      %21 = sbr.rel (%p19) target = $region8
    $region5: #{tpu_custom_call.1} parent=1 // loop_body
      %s23 = ssub.s32 %s18, 1
      %s24 = ssub.s32 %s18, 2
      %s25 = sadd.s32 %s18, 1
      %s26 = ssub.s32 %s18, %s25
      %p27 = scmp.eq.s32.totalorder %s26, 0
      %s29 = sadd.s32 %s28, 1
      %s30 = scalar_select %p27, %s28, %s29
      %p33 = pneg %p27
      %p34 = scmp.eq.s32.totalorder %s18, 1
      %p35 = por %p33, %p34
      %p36 = scmp.ne.s32.totalorder %s28, %s31
      %p37 = scmp.eq.s32.totalorder %s18, 0
      %p38 = por %p36, %p37
      %p39 = scmp.ne.s32.totalorder %s28, %s31
      %p40 = scmp.eq.s32.totalorder %s23, 1
      %p41 = por %p39, %p40
      %p42 = scmp.ne.s32.totalorder %s31, %s32
      %p43 = scmp.eq.s32.totalorder %s23, 0
      %p44 = por %p42, %p43
      %p45 = scmp.ne.s32.totalorder %s31, %s32
      %p46 = scmp.eq.s32.totalorder %s24, 1
      %p47 = por %p45, %p46
      %p49 = scmp.ne.s32.totalorder %s32, %s48
      %p50 = scmp.eq.s32.totalorder %s24, 0
      %p51 = por %p49, %p50
      %s52 = ssub.s32 %s18, %s25
      %p53 = scmp.eq.s32.totalorder %s52, 0
      %s55 = sadd.s32 %s54, 1
      %s56 = scalar_select %p53, %s54, %s55
      %p59 = pneg %p53
      %p60 = scmp.eq.s32.totalorder %s18, 1
      %p61 = por %p59, %p60
      %p62 = scmp.ne.s32.totalorder %s54, %s57
      %p63 = scmp.eq.s32.totalorder %s18, 0
      %p64 = por %p62, %p63
      %p65 = scmp.ne.s32.totalorder %s54, %s57
      %p66 = scmp.eq.s32.totalorder %s23, 1
      %p67 = por %p65, %p66
      %p68 = scmp.ne.s32.totalorder %s57, %s58
      %p69 = scmp.eq.s32.totalorder %s23, 0
      %p70 = por %p68, %p69
      %p71 = scmp.ne.s32.totalorder %s57, %s58
      %p72 = scmp.eq.s32.totalorder %s24, 1
      %p73 = por %p71, %p72
      %p75 = scmp.ne.s32.totalorder %s58, %s74
      %p76 = scmp.eq.s32.totalorder %s24, 0
      %p77 = por %p75, %p76
      %s79 = sadd.s32 %s78, 1
      %p82 = scmp.eq.s32.totalorder %s18, 1
      %p83 = scmp.ne.s32.totalorder %s78, %s80
      %p84 = scmp.eq.s32.totalorder %s18, 0
      %p85 = por %p83, %p84
      %p86 = scmp.ne.s32.totalorder %s78, %s80
      %p87 = scmp.eq.s32.totalorder %s23, 1
      %p88 = por %p86, %p87
      %p89 = scmp.ne.s32.totalorder %s80, %s81
      %p90 = scmp.eq.s32.totalorder %s23, 0
      %p91 = por %p89, %p90
      %p92 = scmp.ne.s32.totalorder %s80, %s81
      %p93 = scmp.eq.s32.totalorder %s24, 1
      %p94 = por %p92, %p93
      %p96 = scmp.ne.s32.totalorder %s81, %s95
      %p97 = scmp.eq.s32.totalorder %s24, 0
      %p98 = por %p96, %p97
      %s99 = ssub.s32 %s18, %s25
      %p100 = scmp.eq.s32.totalorder %s99, 0
      %s102 = sadd.s32 %s101, 1
      %s103 = scalar_select %p100, %s101, %s102
      %p106 = pneg %p100
      %p107 = scmp.eq.s32.totalorder %s18, 1
      %p108 = por %p106, %p107
      %p109 = scmp.ne.s32.totalorder %s101, %s104
      %p110 = scmp.eq.s32.totalorder %s18, 0
      %p111 = por %p109, %p110
      %p112 = scmp.ne.s32.totalorder %s101, %s104
      %p113 = scmp.eq.s32.totalorder %s23, 1
      %p114 = por %p112, %p113
      %p115 = scmp.ne.s32.totalorder %s104, %s105
      %p116 = scmp.eq.s32.totalorder %s23, 0
      %p117 = por %p115, %p116
      %p118 = scmp.ne.s32.totalorder %s104, %s105
      %p119 = scmp.eq.s32.totalorder %s24, 1
      %p120 = por %p118, %p119
      %p122 = scmp.ne.s32.totalorder %s105, %s121
      %p123 = scmp.eq.s32.totalorder %s24, 0
      %p124 = por %p122, %p123
      %p125 = scmp.le.s32.totalorder 1, %s18
      %p126 = scmp.lt.s32.totalorder %s18, 3
      %p127 = pnand %p125, %p126
      %p128 = pneg %p127
      // Predicated region
      $region9: #{tpu_custom_call.1} parent=5 // pred_check
        _
      $region10: #{tpu_custom_call.1} parent=5 // pred_check_branch
        %130 = sbr.rel (%p127) target = $region12
      $region11: #{tpu_custom_call.1} parent=5 // pred_region
        %s131 = ssub.s32 %s18, 1
        // Predicated region
        $region13: #{tpu_custom_call.1} parent=11 // pred_check
          %p132 = pneg %p91
        $region14: #{tpu_custom_call.1} parent=11 // pred_check_branch
          %134 = sbr.rel (%p132) target = $region16
        $region15: #{tpu_custom_call.1} parent=11 // pred_region
          %s136 = ssub.s32 1024, 1024
          %137 = vsyncadd [#allocation6], %s136
          %s138 = sshll.u32 [#allocation7], 4
          %s139 = int_to_ptr.vmem [resolvable:$true] %s138
          %144 = dma.hbm_to_vmem [thread:$0]  %s2, 1024, %s139, [#allocation6], 128, 128, 8
        $region16: #{tpu_custom_call.1} parent=11 // pred_fallthru
          _
      $region12: #{tpu_custom_call.1} parent=5 // pred_fallthru
        _
      %p145 = scmp.lt.s32.totalorder %s18, 2
      // Predicated region
      $region17: #{tpu_custom_call.1} parent=5 // pred_check
        %p146 = pneg %p145
      $region18: #{tpu_custom_call.1} parent=5 // pred_check_branch
        %148 = sbr.rel (%p146) target = $region20
      $region19: #{tpu_custom_call.1} parent=5 // pred_region
        // Predicated region
        $region21: #{tpu_custom_call.1} parent=19 // pred_check
          %p149 = pneg %p38
        $region22: #{tpu_custom_call.1} parent=19 // pred_check_branch
          %151 = sbr.rel (%p149) target = $region24
        $region23: #{tpu_custom_call.1} parent=19 // pred_region
          %s152 = sand.u32 %s28, 1
          %s153 = scalar_lea.sflag [#allocation3], %s152
          %s154 = sand.u32 %s28, 1
          %s155 = smul.addr %s154, 24
          %s156 = scalar_lea.vmem [#allocation2], %s155
          %s158 = ssub.s32 384, 384
          %159 = vsyncadd %s153, %s158
          %s160 = smul.addr %s18, 3
          %s161 = smul.addr %s160, 128
          %s162 = scalar_lea.hbm %s0, %s161
          %s163 = sshll.u32 %s156, 4
          %s164 = int_to_ptr.vmem [resolvable:$true] %s163
          %169 = dma.hbm_to_vmem [thread:$0]  %s162, 384, %s164, %s153, 128, 128, 8
        $region24: #{tpu_custom_call.1} parent=19 // pred_fallthru
          _
        // Predicated region
        $region25: #{tpu_custom_call.1} parent=19 // pred_check
          %p170 = pneg %p64
        $region26: #{tpu_custom_call.1} parent=19 // pred_check_branch
          %172 = sbr.rel (%p170) target = $region28
        $region27: #{tpu_custom_call.1} parent=19 // pred_region
          %s173 = sand.u32 %s18, 1
          %s174 = scalar_lea.sflag [#allocation6], %s173
          %s175 = sand.u32 %s54, 1
          %s176 = smul.addr %s175, 8
          %s177 = scalar_lea.vmem [#allocation5], %s176
          %s179 = ssub.s32 128, 128
          %180 = vsyncadd %s174, %s179
          %s181 = smul.addr %s18, 128
          %s182 = scalar_lea.hbm %s1, %s181
          %s184 = sshll.u32 %s177, 4
          %s185 = int_to_ptr.vmem [resolvable:$true] %s184
          %187 = dma.hbm_to_vmem [thread:$0]  %s182, 128, %s185, %s174
        $region28: #{tpu_custom_call.1} parent=19 // pred_fallthru
          _
      $region20: #{tpu_custom_call.1} parent=5 // pred_fallthru
        _
      %p188 = scmp.le.s32.totalorder 1, %s18
      %p189 = scmp.lt.s32.totalorder %s18, 3
      %p190 = pnand %p188, %p189
      %p191 = pneg %p190
      // Predicated region
      $region29: #{tpu_custom_call.1} parent=5 // pred_check
        _
      $region30: #{tpu_custom_call.1} parent=5 // pred_check_branch
        %193 = sbr.rel (%p190) target = $region32
      $region31: #{tpu_custom_call.1} parent=5 // pred_region
        %s194 = ssub.s32 %s18, 1
        %s195 = sand.u32 %s31, 1
        %s196 = scalar_lea.sflag [#allocation3], %s195
        %s197 = sand.u32 %s31, 1
        %s198 = smul.addr %s197, 24
        %s199 = scalar_lea.vmem [#allocation2], %s198
        // Predicated region
        $region33: #{tpu_custom_call.1} parent=31 // pred_check
          %p200 = pneg %p44
        $region34: #{tpu_custom_call.1} parent=31 // pred_check_branch
          %202 = sbr.rel (%p200) target = $region36
        $region35: #{tpu_custom_call.1} parent=31 // pred_region
          %203 = dma.done %s196, 384
        $region36: #{tpu_custom_call.1} parent=31 // pred_fallthru
          _
        %s204 = sand.u32 %s23, 1
        %s205 = scalar_lea.sflag [#allocation6], %s204
        %s206 = sand.u32 %s57, 1
        %s207 = smul.addr %s206, 8
        %s208 = scalar_lea.vmem [#allocation5], %s207
        // Predicated region
        $region37: #{tpu_custom_call.1} parent=31 // pred_check
          %p209 = pneg %p70
        $region38: #{tpu_custom_call.1} parent=31 // pred_check_branch
          %211 = sbr.rel (%p209) target = $region40
        $region39: #{tpu_custom_call.1} parent=31 // pred_region
          %212 = dma.done %s205, 128
        $region40: #{tpu_custom_call.1} parent=31 // pred_fallthru
          _
        // Predicated region
        $region41: #{tpu_custom_call.1} parent=31 // pred_check
          %p213 = pneg %p91
        $region42: #{tpu_custom_call.1} parent=31 // pred_check_branch
          %215 = sbr.rel (%p213) target = $region44
        $region43: #{tpu_custom_call.1} parent=31 // pred_region
          %216 = dma.done [#allocation6], 1024
        $region44: #{tpu_custom_call.1} parent=31 // pred_fallthru
          _
        %s217 = sand.u32 %s31, 1
        %s218 = scalar_lea.sflag [#allocation3], %s217
        %s219 = sand.u32 %s31, 1
        %s220 = smul.addr %s219, 24
        %s221 = scalar_lea.vmem [#allocation2], %s220
        %p222 = pneg %p44
        %p223 = pneg %p41
        %s224 = sand.u32 %s23, 1
        %s225 = scalar_lea.sflag [#allocation6], %s224
        %s226 = sand.u32 %s57, 1
        %s227 = smul.addr %s226, 8
        %s228 = scalar_lea.vmem [#allocation5], %s227
        %p229 = pneg %p70
        %p230 = pneg %p67
        %p231 = pneg %p91
        %p232 = pneg %p88
        %p233 = pneg %p117
        %p234 = pneg %p114
        %s235 = sand.u32 %s104, 1
        %s236 = scalar_lea.sflag [#allocation4], %s235
        %s237 = sand.u32 %s104, 1
        %s238 = smul.addr %s237, 8
        %s239 = scalar_lea.vmem [#allocation8], %s238
        %v240 = vld [vmem:[%s208] sm:$0xff]
        %v241 = vld [vmem:[#allocation7] sm:$0xff]
        %v242 = vld [vmem:[#allocation7 + $0x8] sm:$0xff]
        %v243 = vld [vmem:[#allocation7 + $0x10] sm:$0xff]
        %v244 = vld [vmem:[#allocation7 + $0x18] sm:$0xff]
        %vm245 = vcmask 261120
        %v247 = vsel %vm245, %v240, 0
        %249 = vmatprep.subr.mxu0 0.0
        %250 = vmatpush1.msra.mxu0 %v241
        %251 = vmatprep.subr.mxu0 0.0
        %252 = vmatpush1.msra.mxu0 %v242
        %253 = vmatprep.subr.mxu0 0.0
        %254 = vmatpush1.msra.mxu0 %v243
        %255 = vmatprep.subr.mxu0 0.0
        %256 = vmatpush1.msra.mxu0 %v244
        %257 = vmatprep.subr.mxu0 0.0
        %258 = vmatpush1.msra.mxu0 0.0
        %259 = vmatprep.subr.mxu0 0.0
        %260 = vmatpush1.msra.mxu0 0.0
        %261 = vmatprep.subr.mxu0 0.0
        %262 = vmatpush1.msra.mxu0 0.0
        %263 = vmatprep.subr.mxu0 0.0
        %264 = vmatpush1.msra.mxu0 0.0
        %265 = vmatprep.subr.mxu0 0.0
        %266 = vmatpush1.msra.mxu0 0.0
        %267 = vmatprep.subr.mxu0 0.0
        %268 = vmatpush1.msra.mxu0 0.0
        %269 = vmatprep.subr.mxu0 0.0
        %270 = vmatpush1.msra.mxu0 0.0
        %271 = vmatprep.subr.mxu0 0.0
        %272 = vmatpush1.msra.mxu0 0.0
        %273 = vmatprep.subr.mxu0 0.0
        %274 = vmatpush1.msra.mxu0 0.0
        %275 = vmatprep.subr.mxu0 0.0
        %276 = vmatpush1.msra.mxu0 0.0
        %277 = vmatprep.subr.mxu0 0.0
        %278 = vmatpush1.msra.mxu0 0.0
        %279 = vmatprep.subr.mxu0 0.0
        %280 = vmatpush1.msra.mxu0 0.0
        %281 = vmatprep.subr.mxu0 0.0
        %282 = vmatpush1.msra.mxu0 0.0
        %283 = vmatprep.subr.mxu0 0.0
        %284 = vmatpush1.msra.mxu0 0.0
        %285 = vmatprep.subr.mxu0 0.0
        %286 = vmatpush1.msra.mxu0 0.0
        %287 = vmatprep.subr.mxu0 0.0
        %288 = vmatpush1.msra.mxu0 0.0
        %289 = vmatprep.subr.mxu0 0.0
        %290 = vmatpush1.msra.mxu0 0.0
        %291 = vmatprep.subr.mxu0 0.0
        %292 = vmatpush1.msra.mxu0 0.0
        %293 = vmatprep.subr.mxu0 0.0
        %294 = vmatpush1.msra.mxu0 0.0
        %295 = vmatprep.subr.mxu0 0.0
        %296 = vmatpush1.msra.mxu0 0.0
        %297 = vmatprep.subr.mxu0 0.0
        %298 = vmatpush1.msra.mxu0 0.0
        %299 = vmatprep.subr.mxu0 0.0
        %300 = vmatpush1.msra.mxu0 0.0
        %301 = vmatprep.subr.mxu0 0.0
        %302 = vmatpush1.msra.mxu0 0.0
        %303 = vmatprep.subr.mxu0 0.0
        %304 = vmatpush1.msra.mxu0 0.0
        %305 = vmatprep.subr.mxu0 0.0
        %306 = vmatpush1.msra.mxu0 0.0
        %307 = vmatprep.subr.mxu0 0.0
        %308 = vmatpush1.msra.mxu0 0.0
        %309 = vmatprep.subr.mxu0 0.0
        %310 = vmatpush1.msra.mxu0 0.0
        %311 = vmatprep.subr.mxu0 0.0
        %312 = vmatpush1.msra.mxu0 0.0
        %313 = vmatprep.mubr.f32.mxu0 0.0
        %314 = vmatmul.mubr.f32.gmra.mrb[0].mxu0 %v247
        %v315 = vpop.f32.mrb[0].mxu0
        %v316 = vadd.f32 0.0, %v315
        %v317 = vpop.f32.mrb[0].mxu0
        %318 = vdwg.mxu0
        %v319 = vld [vmem:[%s199] sm:$0xff]
        %vm320 = vcmask 64512
        %v322 = vsel %vm320, %v319, 0
        %324 = vmatprep.subr.mxu0 0.0
        %325 = vmatpush1.msra.mxu0 %v316
        %326 = vmatprep.subr.mxu0 0.0
        %327 = vmatpush1.msra.mxu0 0.0
        %328 = vmatprep.subr.mxu0 0.0
        %329 = vmatpush1.msra.mxu0 0.0
        %330 = vmatprep.subr.mxu0 0.0
        %331 = vmatpush1.msra.mxu0 0.0
        %332 = vmatprep.subr.mxu0 0.0
        %333 = vmatpush1.msra.mxu0 0.0
        %334 = vmatprep.subr.mxu0 0.0
        %335 = vmatpush1.msra.mxu0 0.0
        %336 = vmatprep.subr.mxu0 0.0
        %337 = vmatpush1.msra.mxu0 0.0
        %338 = vmatprep.subr.mxu0 0.0
        %339 = vmatpush1.msra.mxu0 0.0
        %340 = vmatprep.subr.mxu0 0.0
        %341 = vmatpush1.msra.mxu0 0.0
        %342 = vmatprep.subr.mxu0 0.0
        %343 = vmatpush1.msra.mxu0 0.0
        %344 = vmatprep.subr.mxu0 0.0
        %345 = vmatpush1.msra.mxu0 0.0
        %346 = vmatprep.subr.mxu0 0.0
        %347 = vmatpush1.msra.mxu0 0.0
        %348 = vmatprep.subr.mxu0 0.0
        %349 = vmatpush1.msra.mxu0 0.0
        %350 = vmatprep.subr.mxu0 0.0
        %351 = vmatpush1.msra.mxu0 0.0
        %352 = vmatprep.subr.mxu0 0.0
        %353 = vmatpush1.msra.mxu0 0.0
        %354 = vmatprep.subr.mxu0 0.0
        %355 = vmatpush1.msra.mxu0 0.0
        %356 = vmatprep.subr.mxu0 0.0
        %357 = vmatpush1.msra.mxu0 0.0
        %358 = vmatprep.subr.mxu0 0.0
        %359 = vmatpush1.msra.mxu0 0.0
        %360 = vmatprep.subr.mxu0 0.0
        %361 = vmatpush1.msra.mxu0 0.0
        %362 = vmatprep.subr.mxu0 0.0
        %363 = vmatpush1.msra.mxu0 0.0
        %364 = vmatprep.subr.mxu0 0.0
        %365 = vmatpush1.msra.mxu0 0.0
        %366 = vmatprep.subr.mxu0 0.0
        %367 = vmatpush1.msra.mxu0 0.0
        %368 = vmatprep.subr.mxu0 0.0
        %369 = vmatpush1.msra.mxu0 0.0
        %370 = vmatprep.subr.mxu0 0.0
        %371 = vmatpush1.msra.mxu0 0.0
        %372 = vmatprep.subr.mxu0 0.0
        %373 = vmatpush1.msra.mxu0 0.0
        %374 = vmatprep.subr.mxu0 0.0
        %375 = vmatpush1.msra.mxu0 0.0
        %376 = vmatprep.subr.mxu0 0.0
        %377 = vmatpush1.msra.mxu0 0.0
        %378 = vmatprep.subr.mxu0 0.0
        %379 = vmatpush1.msra.mxu0 0.0
        %380 = vmatprep.subr.mxu0 0.0
        %381 = vmatpush1.msra.mxu0 0.0
        %382 = vmatprep.subr.mxu0 0.0
        %383 = vmatpush1.msra.mxu0 0.0
        %384 = vmatprep.subr.mxu0 0.0
        %385 = vmatpush1.msra.mxu0 0.0
        %386 = vmatprep.subr.mxu0 0.0
        %387 = vmatpush1.msra.mxu0 0.0
        %388 = vmatprep.mubr.f32.mxu0 0.0
        %389 = vmatmul.mubr.f32.gmra.mrb[0].mxu0 %v322
        %v390 = vpop.f32.mrb[0].mxu0
        %v391 = vadd.f32 0.0, %v390
        %v392 = vpop.f32.mrb[0].mxu0
        %393 = vdwg.mxu0
        %v394 = vmax.f32 %v391, 0.0
        %v395 = vadd.f32 %v394, 0.0
        %s396 = scalar_lea.vmem %s199, 8 [#allocation2]
        %v397 = vld [vmem:[%s396] sm:$0xff]
        %399 = vrot.lane.b32.xlu0 %v316, 96
        %v400 = vpop.permute.xlu0 %399
        %v403 = vsel %vm320, %v397, 0
        %405 = vmatprep.subr.mxu0 0.0
        %406 = vmatpush1.msra.mxu0 %v400
        %407 = vmatprep.subr.mxu0 0.0
        %408 = vmatpush1.msra.mxu0 0.0
        %409 = vmatprep.subr.mxu0 0.0
        %410 = vmatpush1.msra.mxu0 0.0
        %411 = vmatprep.subr.mxu0 0.0
        %412 = vmatpush1.msra.mxu0 0.0
        %413 = vmatprep.subr.mxu0 0.0
        %414 = vmatpush1.msra.mxu0 0.0
        %415 = vmatprep.subr.mxu0 0.0
        %416 = vmatpush1.msra.mxu0 0.0
        %417 = vmatprep.subr.mxu0 0.0
        %418 = vmatpush1.msra.mxu0 0.0
        %419 = vmatprep.subr.mxu0 0.0
        %420 = vmatpush1.msra.mxu0 0.0
        %421 = vmatprep.subr.mxu0 0.0
        %422 = vmatpush1.msra.mxu0 0.0
        %423 = vmatprep.subr.mxu0 0.0
        %424 = vmatpush1.msra.mxu0 0.0
        %425 = vmatprep.subr.mxu0 0.0
        %426 = vmatpush1.msra.mxu0 0.0
        %427 = vmatprep.subr.mxu0 0.0
        %428 = vmatpush1.msra.mxu0 0.0
        %429 = vmatprep.subr.mxu0 0.0
        %430 = vmatpush1.msra.mxu0 0.0
        %431 = vmatprep.subr.mxu0 0.0
        %432 = vmatpush1.msra.mxu0 0.0
        %433 = vmatprep.subr.mxu0 0.0
        %434 = vmatpush1.msra.mxu0 0.0
        %435 = vmatprep.subr.mxu0 0.0
        %436 = vmatpush1.msra.mxu0 0.0
        %437 = vmatprep.subr.mxu0 0.0
        %438 = vmatpush1.msra.mxu0 0.0
        %439 = vmatprep.subr.mxu0 0.0
        %440 = vmatpush1.msra.mxu0 0.0
        %441 = vmatprep.subr.mxu0 0.0
        %442 = vmatpush1.msra.mxu0 0.0
        %443 = vmatprep.subr.mxu0 0.0
        %444 = vmatpush1.msra.mxu0 0.0
        %445 = vmatprep.subr.mxu0 0.0
        %446 = vmatpush1.msra.mxu0 0.0
        %447 = vmatprep.subr.mxu0 0.0
        %448 = vmatpush1.msra.mxu0 0.0
        %449 = vmatprep.subr.mxu0 0.0
        %450 = vmatpush1.msra.mxu0 0.0
        %451 = vmatprep.subr.mxu0 0.0
        %452 = vmatpush1.msra.mxu0 0.0
        %453 = vmatprep.subr.mxu0 0.0
        %454 = vmatpush1.msra.mxu0 0.0
        %455 = vmatprep.subr.mxu0 0.0
        %456 = vmatpush1.msra.mxu0 0.0
        %457 = vmatprep.subr.mxu0 0.0
        %458 = vmatpush1.msra.mxu0 0.0
        %459 = vmatprep.subr.mxu0 0.0
        %460 = vmatpush1.msra.mxu0 0.0
        %461 = vmatprep.subr.mxu0 0.0
        %462 = vmatpush1.msra.mxu0 0.0
        %463 = vmatprep.subr.mxu0 0.0
        %464 = vmatpush1.msra.mxu0 0.0
        %465 = vmatprep.subr.mxu0 0.0
        %466 = vmatpush1.msra.mxu0 0.0
        %467 = vmatprep.subr.mxu0 0.0
        %468 = vmatpush1.msra.mxu0 0.0
        %469 = vmatprep.mubr.f32.mxu0 0.0
        %470 = vmatmul.mubr.f32.gmra.mrb[0].mxu0 %v403
        %v471 = vpop.f32.mrb[0].mxu0
        %v472 = vadd.f32 0.0, %v471
        %v473 = vpop.f32.mrb[0].mxu0
        %474 = vdwg.mxu0
        %v475 = vmax.f32 %v472, 0.0
        %v476 = vadd.f32 %v395, %v475
        %s477 = scalar_lea.vmem %s199, 16 [#allocation2]
        %v478 = vld [vmem:[%s477] sm:$0xff]
        %479 = vrot.lane.b32.xlu0 %v316, 64
        %v480 = vpop.permute.xlu0 %479
        %v483 = vsel %vm320, %v478, 0
        %485 = vmatprep.subr.mxu0 0.0
        %486 = vmatpush1.msra.mxu0 %v480
        %487 = vmatprep.subr.mxu0 0.0
        %488 = vmatpush1.msra.mxu0 0.0
        %489 = vmatprep.subr.mxu0 0.0
        %490 = vmatpush1.msra.mxu0 0.0
        %491 = vmatprep.subr.mxu0 0.0
        %492 = vmatpush1.msra.mxu0 0.0
        %493 = vmatprep.subr.mxu0 0.0
        %494 = vmatpush1.msra.mxu0 0.0
        %495 = vmatprep.subr.mxu0 0.0
        %496 = vmatpush1.msra.mxu0 0.0
        %497 = vmatprep.subr.mxu0 0.0
        %498 = vmatpush1.msra.mxu0 0.0
        %499 = vmatprep.subr.mxu0 0.0
        %500 = vmatpush1.msra.mxu0 0.0
        %501 = vmatprep.subr.mxu0 0.0
        %502 = vmatpush1.msra.mxu0 0.0
        %503 = vmatprep.subr.mxu0 0.0
        %504 = vmatpush1.msra.mxu0 0.0
        %505 = vmatprep.subr.mxu0 0.0
        %506 = vmatpush1.msra.mxu0 0.0
        %507 = vmatprep.subr.mxu0 0.0
        %508 = vmatpush1.msra.mxu0 0.0
        %509 = vmatprep.subr.mxu0 0.0
        %510 = vmatpush1.msra.mxu0 0.0
        %511 = vmatprep.subr.mxu0 0.0
        %512 = vmatpush1.msra.mxu0 0.0
        %513 = vmatprep.subr.mxu0 0.0
        %514 = vmatpush1.msra.mxu0 0.0
        %515 = vmatprep.subr.mxu0 0.0
        %516 = vmatpush1.msra.mxu0 0.0
        %517 = vmatprep.subr.mxu0 0.0
        %518 = vmatpush1.msra.mxu0 0.0
        %519 = vmatprep.subr.mxu0 0.0
        %520 = vmatpush1.msra.mxu0 0.0
        %521 = vmatprep.subr.mxu0 0.0
        %522 = vmatpush1.msra.mxu0 0.0
        %523 = vmatprep.subr.mxu0 0.0
        %524 = vmatpush1.msra.mxu0 0.0
        %525 = vmatprep.subr.mxu0 0.0
        %526 = vmatpush1.msra.mxu0 0.0
        %527 = vmatprep.subr.mxu0 0.0
        %528 = vmatpush1.msra.mxu0 0.0
        %529 = vmatprep.subr.mxu0 0.0
        %530 = vmatpush1.msra.mxu0 0.0
        %531 = vmatprep.subr.mxu0 0.0
        %532 = vmatpush1.msra.mxu0 0.0
        %533 = vmatprep.subr.mxu0 0.0
        %534 = vmatpush1.msra.mxu0 0.0
        %535 = vmatprep.subr.mxu0 0.0
        %536 = vmatpush1.msra.mxu0 0.0
        %537 = vmatprep.subr.mxu0 0.0
        %538 = vmatpush1.msra.mxu0 0.0
        %539 = vmatprep.subr.mxu0 0.0
        %540 = vmatpush1.msra.mxu0 0.0
        %541 = vmatprep.subr.mxu0 0.0
        %542 = vmatpush1.msra.mxu0 0.0
        %543 = vmatprep.subr.mxu0 0.0
        %544 = vmatpush1.msra.mxu0 0.0
        %545 = vmatprep.subr.mxu0 0.0
        %546 = vmatpush1.msra.mxu0 0.0
        %547 = vmatprep.subr.mxu0 0.0
        %548 = vmatpush1.msra.mxu0 0.0
        %549 = vmatprep.mubr.f32.mxu0 0.0
        %550 = vmatmul.mubr.f32.gmra.mrb[0].mxu0 %v483
        %v551 = vpop.f32.mrb[0].mxu0
        %v552 = vadd.f32 0.0, %v551
        %v553 = vpop.f32.mrb[0].mxu0
        %554 = vdwg.mxu0
        %v555 = vmax.f32 %v552, 0.0
        %v556 = vadd.f32 %v476, %v555
        %v557 = vmax.f32 %v556, 0.0
        %v558 = vmul.f32 %v557, 0.33333334
        %v559 = vsel %vm245, %v558, 0.0
        %560 = vadd.xlane.f32.xlu0 %v559
        %v561 = vpop.xlane.xlu0 %560
        %v562 = vrcp.pop 32.0
        %v563 = vmul.f32 %v561, %v562
        %v564 = vsub.f32 %v558, %v563
        %v565 = vmul.f32 %v564, %v564
        %v566 = vsel %vm245, %v565, 0.0
        %567 = vadd.xlane.f32.xlu0 %v566
        %v568 = vpop.xlane.xlu0 %567
        %v569 = vmul.f32 %v568, %v562
        %v570 = vadd.f32 %v569, 1e-05
        %v571 = vrsqrt.pop %v570
        %v572 = vmul.f32 %v564, %v571
        %s573 = scalar_lea.vmem [#allocation7], 32
        %v574 = vld [vmem:[%s573] sm:$0xff]
        %v575 = vld [vmem:[%s573 + $0x8] sm:$0xff]
        %v576 = vld [vmem:[%s573 + $0x10] sm:$0xff]
        %v577 = vld [vmem:[%s573 + $0x18] sm:$0xff]
        %v579 = vsel %vm245, %v572, 0
        %581 = vmatprep.subr.mxu0 0.0
        %582 = vmatpush1.msra.mxu0 %v574
        %583 = vmatprep.subr.mxu0 0.0
        %584 = vmatpush1.msra.mxu0 %v575
        %585 = vmatprep.subr.mxu0 0.0
        %586 = vmatpush1.msra.mxu0 %v576
        %587 = vmatprep.subr.mxu0 0.0
        %588 = vmatpush1.msra.mxu0 %v577
        %589 = vmatprep.subr.mxu0 0.0
        %590 = vmatpush1.msra.mxu0 0.0
        %591 = vmatprep.subr.mxu0 0.0
        %592 = vmatpush1.msra.mxu0 0.0
        %593 = vmatprep.subr.mxu0 0.0
        %594 = vmatpush1.msra.mxu0 0.0
        %595 = vmatprep.subr.mxu0 0.0
        %596 = vmatpush1.msra.mxu0 0.0
        %597 = vmatprep.subr.mxu0 0.0
        %598 = vmatpush1.msra.mxu0 0.0
        %599 = vmatprep.subr.mxu0 0.0
        %600 = vmatpush1.msra.mxu0 0.0
        %601 = vmatprep.subr.mxu0 0.0
        %602 = vmatpush1.msra.mxu0 0.0
        %603 = vmatprep.subr.mxu0 0.0
        %604 = vmatpush1.msra.mxu0 0.0
        %605 = vmatprep.subr.mxu0 0.0
        %606 = vmatpush1.msra.mxu0 0.0
        %607 = vmatprep.subr.mxu0 0.0
        %608 = vmatpush1.msra.mxu0 0.0
        %609 = vmatprep.subr.mxu0 0.0
        %610 = vmatpush1.msra.mxu0 0.0
        %611 = vmatprep.subr.mxu0 0.0
        %612 = vmatpush1.msra.mxu0 0.0
        %613 = vmatprep.subr.mxu0 0.0
        %614 = vmatpush1.msra.mxu0 0.0
        %615 = vmatprep.subr.mxu0 0.0
        %616 = vmatpush1.msra.mxu0 0.0
        %617 = vmatprep.subr.mxu0 0.0
        %618 = vmatpush1.msra.mxu0 0.0
        %619 = vmatprep.subr.mxu0 0.0
        %620 = vmatpush1.msra.mxu0 0.0
        %621 = vmatprep.subr.mxu0 0.0
        %622 = vmatpush1.msra.mxu0 0.0
        %623 = vmatprep.subr.mxu0 0.0
        %624 = vmatpush1.msra.mxu0 0.0
        %625 = vmatprep.subr.mxu0 0.0
        %626 = vmatpush1.msra.mxu0 0.0
        %627 = vmatprep.subr.mxu0 0.0
        %628 = vmatpush1.msra.mxu0 0.0
        %629 = vmatprep.subr.mxu0 0.0
        %630 = vmatpush1.msra.mxu0 0.0
        %631 = vmatprep.subr.mxu0 0.0
        %632 = vmatpush1.msra.mxu0 0.0
        %633 = vmatprep.subr.mxu0 0.0
        %634 = vmatpush1.msra.mxu0 0.0
        %635 = vmatprep.subr.mxu0 0.0
        %636 = vmatpush1.msra.mxu0 0.0
        %637 = vmatprep.subr.mxu0 0.0
        %638 = vmatpush1.msra.mxu0 0.0
        %639 = vmatprep.subr.mxu0 0.0
        %640 = vmatpush1.msra.mxu0 0.0
        %641 = vmatprep.subr.mxu0 0.0
        %642 = vmatpush1.msra.mxu0 0.0
        %643 = vmatprep.subr.mxu0 0.0
        %644 = vmatpush1.msra.mxu0 0.0
        %645 = vmatprep.mubr.f32.mxu0 0.0
        %646 = vmatmul.mubr.f32.gmra.mrb[0].mxu0 %v579
        %v647 = vpop.f32.mrb[0].mxu0
        %v648 = vadd.f32 0.0, %v647
        %v649 = vpop.f32.mrb[0].mxu0
        %650 = vdwg.mxu0
        %651 = vmatprep.subr.mxu0 0.0
        %652 = vmatpush1.msra.mxu0 %v648
        %653 = vmatprep.subr.mxu0 0.0
        %654 = vmatpush1.msra.mxu0 0.0
        %655 = vmatprep.subr.mxu0 0.0
        %656 = vmatpush1.msra.mxu0 0.0
        %657 = vmatprep.subr.mxu0 0.0
        %658 = vmatpush1.msra.mxu0 0.0
        %659 = vmatprep.subr.mxu0 0.0
        %660 = vmatpush1.msra.mxu0 0.0
        %661 = vmatprep.subr.mxu0 0.0
        %662 = vmatpush1.msra.mxu0 0.0
        %663 = vmatprep.subr.mxu0 0.0
        %664 = vmatpush1.msra.mxu0 0.0
        %665 = vmatprep.subr.mxu0 0.0
        %666 = vmatpush1.msra.mxu0 0.0
        %667 = vmatprep.subr.mxu0 0.0
        %668 = vmatpush1.msra.mxu0 0.0
        %669 = vmatprep.subr.mxu0 0.0
        %670 = vmatpush1.msra.mxu0 0.0
        %671 = vmatprep.subr.mxu0 0.0
        %672 = vmatpush1.msra.mxu0 0.0
        %673 = vmatprep.subr.mxu0 0.0
        %674 = vmatpush1.msra.mxu0 0.0
        %675 = vmatprep.subr.mxu0 0.0
        %676 = vmatpush1.msra.mxu0 0.0
        %677 = vmatprep.subr.mxu0 0.0
        %678 = vmatpush1.msra.mxu0 0.0
        %679 = vmatprep.subr.mxu0 0.0
        %680 = vmatpush1.msra.mxu0 0.0
        %681 = vmatprep.subr.mxu0 0.0
        %682 = vmatpush1.msra.mxu0 0.0
        %683 = vmatprep.subr.mxu0 0.0
        %684 = vmatpush1.msra.mxu0 0.0
        %685 = vmatprep.subr.mxu0 0.0
        %686 = vmatpush1.msra.mxu0 0.0
        %687 = vmatprep.subr.mxu0 0.0
        %688 = vmatpush1.msra.mxu0 0.0
        %689 = vmatprep.subr.mxu0 0.0
        %690 = vmatpush1.msra.mxu0 0.0
        %691 = vmatprep.subr.mxu0 0.0
        %692 = vmatpush1.msra.mxu0 0.0
        %693 = vmatprep.subr.mxu0 0.0
        %694 = vmatpush1.msra.mxu0 0.0
        %695 = vmatprep.subr.mxu0 0.0
        %696 = vmatpush1.msra.mxu0 0.0
        %697 = vmatprep.subr.mxu0 0.0
        %698 = vmatpush1.msra.mxu0 0.0
        %699 = vmatprep.subr.mxu0 0.0
        %700 = vmatpush1.msra.mxu0 0.0
        %701 = vmatprep.subr.mxu0 0.0
        %702 = vmatpush1.msra.mxu0 0.0
        %703 = vmatprep.subr.mxu0 0.0
        %704 = vmatpush1.msra.mxu0 0.0
        %705 = vmatprep.subr.mxu0 0.0
        %706 = vmatpush1.msra.mxu0 0.0
        %707 = vmatprep.subr.mxu0 0.0
        %708 = vmatpush1.msra.mxu0 0.0
        %709 = vmatprep.subr.mxu0 0.0
        %710 = vmatpush1.msra.mxu0 0.0
        %711 = vmatprep.subr.mxu0 0.0
        %712 = vmatpush1.msra.mxu0 0.0
        %713 = vmatprep.subr.mxu0 0.0
        %714 = vmatpush1.msra.mxu0 0.0
        %715 = vmatprep.mubr.f32.mxu0 0.0
        %716 = vmatmul.mubr.f32.gmra.mrb[0].mxu0 %v322
        %v717 = vpop.f32.mrb[0].mxu0
        %v718 = vadd.f32 0.0, %v717
        %v719 = vpop.f32.mrb[0].mxu0
        %720 = vdwg.mxu0
        %v721 = vmax.f32 %v718, 0.0
        %v722 = vadd.f32 %v721, 0.0
        %724 = vrot.lane.b32.xlu0 %v648, 96
        %v725 = vpop.permute.xlu0 %724
        %727 = vmatprep.subr.mxu0 0.0
        %728 = vmatpush1.msra.mxu0 %v725
        %729 = vmatprep.subr.mxu0 0.0
        %730 = vmatpush1.msra.mxu0 0.0
        %731 = vmatprep.subr.mxu0 0.0
        %732 = vmatpush1.msra.mxu0 0.0
        %733 = vmatprep.subr.mxu0 0.0
        %734 = vmatpush1.msra.mxu0 0.0
        %735 = vmatprep.subr.mxu0 0.0
        %736 = vmatpush1.msra.mxu0 0.0
        %737 = vmatprep.subr.mxu0 0.0
        %738 = vmatpush1.msra.mxu0 0.0
        %739 = vmatprep.subr.mxu0 0.0
        %740 = vmatpush1.msra.mxu0 0.0
        %741 = vmatprep.subr.mxu0 0.0
        %742 = vmatpush1.msra.mxu0 0.0
        %743 = vmatprep.subr.mxu0 0.0
        %744 = vmatpush1.msra.mxu0 0.0
        %745 = vmatprep.subr.mxu0 0.0
        %746 = vmatpush1.msra.mxu0 0.0
        %747 = vmatprep.subr.mxu0 0.0
        %748 = vmatpush1.msra.mxu0 0.0
        %749 = vmatprep.subr.mxu0 0.0
        %750 = vmatpush1.msra.mxu0 0.0
        %751 = vmatprep.subr.mxu0 0.0
        %752 = vmatpush1.msra.mxu0 0.0
        %753 = vmatprep.subr.mxu0 0.0
        %754 = vmatpush1.msra.mxu0 0.0
        %755 = vmatprep.subr.mxu0 0.0
        %756 = vmatpush1.msra.mxu0 0.0
        %757 = vmatprep.subr.mxu0 0.0
        %758 = vmatpush1.msra.mxu0 0.0
        %759 = vmatprep.subr.mxu0 0.0
        %760 = vmatpush1.msra.mxu0 0.0
        %761 = vmatprep.subr.mxu0 0.0
        %762 = vmatpush1.msra.mxu0 0.0
        %763 = vmatprep.subr.mxu0 0.0
        %764 = vmatpush1.msra.mxu0 0.0
        %765 = vmatprep.subr.mxu0 0.0
        %766 = vmatpush1.msra.mxu0 0.0
        %767 = vmatprep.subr.mxu0 0.0
        %768 = vmatpush1.msra.mxu0 0.0
        %769 = vmatprep.subr.mxu0 0.0
        %770 = vmatpush1.msra.mxu0 0.0
        %771 = vmatprep.subr.mxu0 0.0
        %772 = vmatpush1.msra.mxu0 0.0
        %773 = vmatprep.subr.mxu0 0.0
        %774 = vmatpush1.msra.mxu0 0.0
        %775 = vmatprep.subr.mxu0 0.0
        %776 = vmatpush1.msra.mxu0 0.0
        %777 = vmatprep.subr.mxu0 0.0
        %778 = vmatpush1.msra.mxu0 0.0
        %779 = vmatprep.subr.mxu0 0.0
        %780 = vmatpush1.msra.mxu0 0.0
        %781 = vmatprep.subr.mxu0 0.0
        %782 = vmatpush1.msra.mxu0 0.0
        %783 = vmatprep.subr.mxu0 0.0
        %784 = vmatpush1.msra.mxu0 0.0
        %785 = vmatprep.subr.mxu0 0.0
        %786 = vmatpush1.msra.mxu0 0.0
        %787 = vmatprep.subr.mxu0 0.0
        %788 = vmatpush1.msra.mxu0 0.0
        %789 = vmatprep.subr.mxu0 0.0
        %790 = vmatpush1.msra.mxu0 0.0
        %791 = vmatprep.mubr.f32.mxu0 0.0
        %792 = vmatmul.mubr.f32.gmra.mrb[0].mxu0 %v403
        %v793 = vpop.f32.mrb[0].mxu0
        %v794 = vadd.f32 0.0, %v793
        %v795 = vpop.f32.mrb[0].mxu0
        %796 = vdwg.mxu0
        %v797 = vmax.f32 %v794, 0.0
        %v798 = vadd.f32 %v722, %v797
        %799 = vrot.lane.b32.xlu0 %v648, 64
        %v800 = vpop.permute.xlu0 %799
        %802 = vmatprep.subr.mxu0 0.0
        %803 = vmatpush1.msra.mxu0 %v800
        %804 = vmatprep.subr.mxu0 0.0
        %805 = vmatpush1.msra.mxu0 0.0
        %806 = vmatprep.subr.mxu0 0.0
        %807 = vmatpush1.msra.mxu0 0.0
        %808 = vmatprep.subr.mxu0 0.0
        %809 = vmatpush1.msra.mxu0 0.0
        %810 = vmatprep.subr.mxu0 0.0
        %811 = vmatpush1.msra.mxu0 0.0
        %812 = vmatprep.subr.mxu0 0.0
        %813 = vmatpush1.msra.mxu0 0.0
        %814 = vmatprep.subr.mxu0 0.0
        %815 = vmatpush1.msra.mxu0 0.0
        %816 = vmatprep.subr.mxu0 0.0
        %817 = vmatpush1.msra.mxu0 0.0
        %818 = vmatprep.subr.mxu0 0.0
        %819 = vmatpush1.msra.mxu0 0.0
        %820 = vmatprep.subr.mxu0 0.0
        %821 = vmatpush1.msra.mxu0 0.0
        %822 = vmatprep.subr.mxu0 0.0
        %823 = vmatpush1.msra.mxu0 0.0
        %824 = vmatprep.subr.mxu0 0.0
        %825 = vmatpush1.msra.mxu0 0.0
        %826 = vmatprep.subr.mxu0 0.0
        %827 = vmatpush1.msra.mxu0 0.0
        %828 = vmatprep.subr.mxu0 0.0
        %829 = vmatpush1.msra.mxu0 0.0
        %830 = vmatprep.subr.mxu0 0.0
        %831 = vmatpush1.msra.mxu0 0.0
        %832 = vmatprep.subr.mxu0 0.0
        %833 = vmatpush1.msra.mxu0 0.0
        %834 = vmatprep.subr.mxu0 0.0
        %835 = vmatpush1.msra.mxu0 0.0
        %836 = vmatprep.subr.mxu0 0.0
        %837 = vmatpush1.msra.mxu0 0.0
        %838 = vmatprep.subr.mxu0 0.0
        %839 = vmatpush1.msra.mxu0 0.0
        %840 = vmatprep.subr.mxu0 0.0
        %841 = vmatpush1.msra.mxu0 0.0
        %842 = vmatprep.subr.mxu0 0.0
        %843 = vmatpush1.msra.mxu0 0.0
        %844 = vmatprep.subr.mxu0 0.0
        %845 = vmatpush1.msra.mxu0 0.0
        %846 = vmatprep.subr.mxu0 0.0
        %847 = vmatpush1.msra.mxu0 0.0
        %848 = vmatprep.subr.mxu0 0.0
        %849 = vmatpush1.msra.mxu0 0.0
        %850 = vmatprep.subr.mxu0 0.0
        %851 = vmatpush1.msra.mxu0 0.0
        %852 = vmatprep.subr.mxu0 0.0
        %853 = vmatpush1.msra.mxu0 0.0
        %854 = vmatprep.subr.mxu0 0.0
        %855 = vmatpush1.msra.mxu0 0.0
        %856 = vmatprep.subr.mxu0 0.0
        %857 = vmatpush1.msra.mxu0 0.0
        %858 = vmatprep.subr.mxu0 0.0
        %859 = vmatpush1.msra.mxu0 0.0
        %860 = vmatprep.subr.mxu0 0.0
        %861 = vmatpush1.msra.mxu0 0.0
        %862 = vmatprep.subr.mxu0 0.0
        %863 = vmatpush1.msra.mxu0 0.0
        %864 = vmatprep.subr.mxu0 0.0
        %865 = vmatpush1.msra.mxu0 0.0
        %866 = vmatprep.mubr.f32.mxu0 0.0
        %867 = vmatmul.mubr.f32.gmra.mrb[0].mxu0 %v483
        %v868 = vpop.f32.mrb[0].mxu0
        %v869 = vadd.f32 0.0, %v868
        %v870 = vpop.f32.mrb[0].mxu0
        %871 = vdwg.mxu0
        %v872 = vmax.f32 %v869, 0.0
        %v873 = vadd.f32 %v798, %v872
        %v874 = vmax.f32 %v873, 0.0
        %v875 = vmul.f32 %v874, 0.33333334
        %v876 = vsel %vm245, %v875, 0.0
        %877 = vadd.xlane.f32.xlu0 %v876
        %v878 = vpop.xlane.xlu0 %877
        %v879 = vmul.f32 %v878, %v562
        %v880 = vsub.f32 %v875, %v879
        %v881 = vmul.f32 %v880, %v880
        %v882 = vsel %vm245, %v881, 0.0
        %883 = vadd.xlane.f32.xlu0 %v882
        %v884 = vpop.xlane.xlu0 %883
        %v885 = vmul.f32 %v884, %v562
        %v886 = vadd.f32 %v885, 1e-05
        %v887 = vrsqrt.pop %v886
        %v888 = vmul.f32 %v880, %v887
        %889 = vst.msk [vmem:[%s239] sm:$0xff] %vm245, %v888
        %s890 = sand.u32 %s104, 1
        %s891 = scalar_lea.sflag [#allocation4], %s890
        %s892 = sand.u32 %s104, 1
        %s893 = smul.addr %s892, 8
        %s894 = scalar_lea.vmem [#allocation8], %s893
        // Predicated region
        $region45: #{tpu_custom_call.1} parent=31 // pred_check
          %p895 = pneg %p114
        $region46: #{tpu_custom_call.1} parent=31 // pred_check_branch
          %897 = sbr.rel (%p895) target = $region48
        $region47: #{tpu_custom_call.1} parent=31 // pred_region
          %s899 = ssub.s32 128, 128
          %900 = vsyncadd %s891, %s899
          %s901 = smul.addr %s23, 128
          %s902 = scalar_lea.hbm %s3, %s901
          %s904 = sshll.u32 %s894, 4
          %s905 = int_to_ptr.vmem [resolvable:$true] %s904
          %907 = dma.vmem_to_hbm [thread:$0]  %s905, 128, %s902, %s891
        $region48: #{tpu_custom_call.1} parent=31 // pred_fallthru
          _
      $region32: #{tpu_custom_call.1} parent=5 // pred_fallthru
        _
      %p908 = scmp.le.s32.totalorder 2, %s18
      // Predicated region
      $region49: #{tpu_custom_call.1} parent=5 // pred_check
        %p909 = pneg %p908
      $region50: #{tpu_custom_call.1} parent=5 // pred_check_branch
        %911 = sbr.rel (%p909) target = $region52
      $region51: #{tpu_custom_call.1} parent=5 // pred_region
        %s912 = ssub.s32 %s18, 2
        // Predicated region
        $region53: #{tpu_custom_call.1} parent=51 // pred_check
          %p913 = pneg %p120
        $region54: #{tpu_custom_call.1} parent=51 // pred_check_branch
          %915 = sbr.rel (%p913) target = $region56
        $region55: #{tpu_custom_call.1} parent=51 // pred_region
          %s916 = sand.u32 %s105, 1
          %s917 = scalar_lea.sflag [#allocation4], %s916
          %s918 = sand.u32 %s105, 1
          %s919 = smul.addr %s918, 8
          %s920 = scalar_lea.vmem [#allocation8], %s919
          %921 = dma.done %s917, 128
        $region56: #{tpu_custom_call.1} parent=51 // pred_fallthru
          _
      $region52: #{tpu_custom_call.1} parent=5 // pred_fallthru
        _
    $region6: #{tpu_custom_call.1} parent=1 // loop_footer
      %s22 = sadd.s32 1, %s18
    $region7: #{tpu_custom_call.1} parent=1 // loop_footer_branch
      %17 = sbr.rel target = $region3
    $region8: #{tpu_custom_call.1} parent=1 // loop_exit
      _
    %922 = vsyncpa [#allocation3], 1
    %s923 = scalar_lea.sflag [#allocation3], 1
    %924 = vsyncpa %s923, 1
    %925 = vsyncpa [#allocation6], 1
    %s926 = scalar_lea.sflag [#allocation6], 1
    %927 = vsyncpa %s926, 1
    %928 = vsyncpa [#allocation4], 1
    %s929 = scalar_lea.sflag [#allocation4], 1
    %930 = vsyncpa %s929, 1

</llo_original>
